<compile_context>
chip_gen: v5e
topology: v5e:2x2
jax: 0.10.0
libtpu: 0.0.40
codegen_flags: <defaults>
</compile_context>

<pallas_src>
import jax
import jax.numpy as jnp
from jax.experimental import pallas as pl
from jax.experimental.pallas import tpu as pltpu

_F_IN = 12      # logical feature width (matches PyTorch Linear(12, 128))
_F_PAD = 16     # feature width padded to the bf16 sublane tile (zero columns/rows)
_HID = 128      # hidden width


def _round_up(x, m):
    return (x + m - 1) // m * m


def _ebm_mlp_kernel(x_ref, w1_ref, b1_ref, w2_ref, b2_ref,
                    w3_ref, b3_ref, w4_ref, b4_ref, out_ref):
    """One M-tile of the 4-layer MLP:
    3x (bf16 MXU matmul -> f32 bias -> LeakyReLU) + 128->1 head as VPU reduce."""
    slope = jnp.float32(0.01)  # PyTorch nn.LeakyReLU default negative_slope

    x = x_ref[...]                                                    # (tm, 16) bf16

    h = jnp.dot(x, w1_ref[...], preferred_element_type=jnp.float32)
    h = h + b1_ref[...]
    h = jnp.where(h > 0, h, slope * h)                                # (tm, 128) f32

    h = jnp.dot(h.astype(jnp.bfloat16), w2_ref[...],
                preferred_element_type=jnp.float32) + b2_ref[...]
    h = jnp.where(h > 0, h, slope * h)                                # (tm, 128) f32

    h = jnp.dot(h.astype(jnp.bfloat16), w3_ref[...],
                preferred_element_type=jnp.float32) + b3_ref[...]
    h = jnp.where(h > 0, h, slope * h)                                # (tm, 128) f32

    # Linear(128, 1): multiply by the (1, 128) weight row and reduce over lanes.
    e = jnp.sum(h * w4_ref[...], axis=-1, keepdims=True) + b4_ref[0]  # (tm, 1) f32
    out_ref[...] = e.astype(out_ref.dtype)


def init_params(key, dtype=jnp.float32):
    """PyTorch nn.Linear-style init (uniform +-1/sqrt(fan_in)).
    Weights stored as (in_features, out_features)."""
    dims = [(12, 128), (128, 128), (128, 128), (128, 1)]
    params = []
    for fan_in, fan_out in dims:
        key, kw, kb = jax.random.split(key, 3)
        bound = 1.0 / jnp.sqrt(float(fan_in))
        w = jax.random.uniform(kw, (fan_in, fan_out), dtype, -bound, bound)
        b = jax.random.uniform(kb, (1, fan_out), dtype, -bound, bound)
        params += [w, b]
    return tuple(params)


def relation_ebm3d_forward(inputs, params, *, tile_m=512):
    """inputs: (sbox_centers, sbox_sizes, obox_centers, obox_sizes[, rels]),
    each box tensor (B, N_rel, 3).  Returns (B, N_rel, 1)."""
    sbox_centers, sbox_sizes, obox_centers, obox_sizes = inputs[:4]
    orig_dtype = sbox_centers.dtype
    B, N, _ = sbox_centers.shape
    M = B * N

    sc = sbox_centers.astype(jnp.float32)
    ss = sbox_sizes.astype(jnp.float32)
    oc = obox_centers.astype(jnp.float32)
    osz = obox_sizes.astype(jnp.float32)

    # feats == cat([subjs - objs, subjs - objs[..., (3,4,5,0,1,2)]], -1), expanded
    # so that no gather/permutation is needed.
    smin, smax = sc - 0.5 * ss, sc + 0.5 * ss
    omin, omax = oc - 0.5 * osz, oc + 0.5 * osz
    feats = jnp.concatenate(
        [smin - omin, smax - omax, smin - omax, smax - omin], axis=-1)  # (B, N, 12)
    feats = feats.reshape(M, _F_IN).astype(jnp.bfloat16)

    # Tile / pad the M dimension (sublane-aligned tile, zero-padded ragged tail).
    tile_m = _round_up(min(int(tile_m), _round_up(M, 8)), 8)
    m_pad = _round_up(M, tile_m)
    feats = jnp.pad(feats, ((0, m_pad - M), (0, _F_PAD - _F_IN)))       # (m_pad, 16)

    w1, b1, w2, b2, w3, b3, w4, b4 = params
    w1p = jnp.pad(w1, ((0, _F_PAD - _F_IN), (0, 0))).astype(jnp.bfloat16)  # (16, 128)
    w2b = w2.astype(jnp.bfloat16)                                          # (128, 128)
    w3b = w3.astype(jnp.bfloat16)                                          # (128, 128)
    w4r = w4.reshape(1, _HID).astype(jnp.float32)                          # (1, 128)
    b1f = b1.astype(jnp.float32)
    b2f = b2.astype(jnp.float32)
    b3f = b3.astype(jnp.float32)
    b4s = b4.reshape(1).astype(jnp.float32)                                # (1,) SMEM

    grid = (m_pad // tile_m,)
    row_map = lambda i: (i, 0)       # feats / output: walk down M
    const_map = lambda i: (0, 0)     # weights/biases: VMEM-resident across steps

    out = pl.pallas_call(
        _ebm_mlp_kernel,
        out_shape=jax.ShapeDtypeStruct((m_pad, 1), jnp.float32),
        grid=grid,
        in_specs=[
            pl.BlockSpec((tile_m, _F_PAD), row_map),     # feats tile
            pl.BlockSpec((_F_PAD, _HID), const_map),     # w1 (bf16)
            pl.BlockSpec((1, _HID), const_map),          # b1 (f32)
            pl.BlockSpec((_HID, _HID), const_map),       # w2 (bf16)
            pl.BlockSpec((1, _HID), const_map),          # b2 (f32)
            pl.BlockSpec((_HID, _HID), const_map),       # w3 (bf16)
            pl.BlockSpec((1, _HID), const_map),          # b3 (f32)
            pl.BlockSpec((1, _HID), const_map),          # w4 row (f32)
            pl.BlockSpec(memory_space=pltpu.MemorySpace.SMEM),  # b4 scalar
        ],
        out_specs=pl.BlockSpec((tile_m, 1), row_map),
        compiler_params=pltpu.CompilerParams(
            dimension_semantics=("parallel",),
        ),
    )(feats, w1p, b1f, w2b, b2f, w3b, b3f, w4r, b4s)

    return out[:M].reshape(B, N, 1).astype(orig_dtype)


def _reference_forward(inputs, params):
    """Pure-JAX reference (mirrors the kernel's bf16-operand / f32-accumulate math)."""
    sc, ss, oc, osz = inputs[:4]
    subjs = jnp.concatenate([sc - ss / 2, sc + ss / 2], -1)
    objs = jnp.concatenate([oc - osz / 2, oc + osz / 2], -1)
    feats = jnp.concatenate(
        [subjs - objs, subjs - objs[..., jnp.array([3, 4, 5, 0, 1, 2])]], -1)
    w1, b1, w2, b2, w3, b3, w4, b4 = params

    def layer(x, w, b):
        y = jnp.dot(x.astype(jnp.bfloat16), w.astype(jnp.bfloat16),
                    preferred_element_type=jnp.float32) + b[0]
        return jnp.where(y > 0, y, 0.01 * y)

    h = layer(feats.astype(jnp.float32), w1, b1)
    h = layer(h, w2, b2)
    h = layer(h, w3, b3)
    return jnp.sum(h * w4[:, 0], axis=-1, keepdims=True) + b4[0]


if __name__ == "__main__":
    key = jax.random.PRNGKey(0)
    kp, k1, k2, k3, k4 = jax.random.split(key, 5)

    # Small case: B=2, N_rel=8 (single tile).
    B, N_REL = 2, 8
    sbox_centers = jax.random.normal(k1, (B, N_REL, 3), jnp.float32)
    sbox_sizes = jax.random.uniform(k2, (B, N_REL, 3), jnp.float32, 0.1, 1.0)
    obox_centers = jax.random.normal(k3, (B, N_REL, 3), jnp.float32)
    obox_sizes = jax.random.uniform(k4, (B, N_REL, 3), jnp.float32, 0.1, 1.0)
    rels = jnp.zeros((B, N_REL), jnp.int32)  # unused by the forward pass

    params = init_params(kp)
    inputs = (sbox_centers, sbox_sizes, obox_centers, obox_sizes, rels)

    out = jax.block_until_ready(relation_ebm3d_forward(inputs, params))
    ref = _reference_forward(inputs, params)
    assert out.shape == (B, N_REL, 1)
    assert jnp.allclose(out, ref, atol=1e-2, rtol=1e-2)

    # Second case: exercises multi-step grid + ragged-tail padding
    # (M = 300, tile_m = 128 -> grid of 3 steps, 84 padded rows).
    B2, N2 = 3, 100
    kk = jax.random.split(jax.random.PRNGKey(1), 4)
    inputs2 = (jax.random.normal(kk[0], (B2, N2, 3), jnp.float32),
               jax.random.uniform(kk[1], (B2, N2, 3), jnp.float32, 0.1, 1.0),
               jax.random.normal(kk[2], (B2, N2, 3), jnp.float32),
               jax.random.uniform(kk[3], (B2, N2, 3), jnp.float32, 0.1, 1.0))
    out2 = jax.block_until_ready(relation_ebm3d_forward(inputs2, params, tile_m=128))
    ref2 = _reference_forward(inputs2, params)
    assert out2.shape == (B2, N2, 1)
    assert jnp.allclose(out2, ref2, atol=1e-2, rtol=1e-2)

    print("KERNEL_OK")
</pallas_src>

<mosaic_0001>
module attributes {stable_mosaic.version = 11 : i64} {
  func.func @_ebm_mlp_kernel(%arg0: i32, %arg1: memref<16x16xbf16, #tpu.memory_space<vmem>>, %arg2: memref<16x128xbf16, #tpu.memory_space<vmem>>, %arg3: memref<1x128xf32, #tpu.memory_space<vmem>>, %arg4: memref<128x128xbf16, #tpu.memory_space<vmem>>, %arg5: memref<1x128xf32, #tpu.memory_space<vmem>>, %arg6: memref<128x128xbf16, #tpu.memory_space<vmem>>, %arg7: memref<1x128xf32, #tpu.memory_space<vmem>>, %arg8: memref<1x128xf32, #tpu.memory_space<vmem>>, %arg9: memref<1xf32, #tpu.memory_space<smem>>, %arg10: memref<16x1xf32, #tpu.memory_space<vmem>>) attributes {dimension_semantics = [#tpu.dimension_semantics<parallel>], iteration_bounds = array<i64: 1>, scalar_prefetch = 0 : i64, scratch_operands = 0 : i64, tpu.core_type = #tpu.core_type<tc>, window_params = [{transform_indices = @transform_0, window_bounds = array<i64: 16, 16>}, {pipeline_mode = #tpu.pipeline_mode<synchronous>, transform_indices = @transform_1, window_bounds = array<i64: 16, 128>}, {pipeline_mode = #tpu.pipeline_mode<synchronous>, transform_indices = @transform_2, window_bounds = array<i64: 1, 128>}, {pipeline_mode = #tpu.pipeline_mode<synchronous>, transform_indices = @transform_3, window_bounds = array<i64: 128, 128>}, {pipeline_mode = #tpu.pipeline_mode<synchronous>, transform_indices = @transform_4, window_bounds = array<i64: 1, 128>}, {pipeline_mode = #tpu.pipeline_mode<synchronous>, transform_indices = @transform_5, window_bounds = array<i64: 128, 128>}, {pipeline_mode = #tpu.pipeline_mode<synchronous>, transform_indices = @transform_6, window_bounds = array<i64: 1, 128>}, {pipeline_mode = #tpu.pipeline_mode<synchronous>, transform_indices = @transform_7, window_bounds = array<i64: 1, 128>}, {transform_indices = @transform_8, window_bounds = array<i64: 1>}, {transform_indices = @transform_9, window_bounds = array<i64: 16, 1>}]} {
    %c0 = arith.constant 0 : index
    %c0_0 = arith.constant 0 : index
    %0 = vector.load %arg1[%c0, %c0_0] : memref<16x16xbf16, #tpu.memory_space<vmem>>, vector<16x16xbf16>
    %c0_1 = arith.constant 0 : index
    %c0_2 = arith.constant 0 : index
    %1 = vector.load %arg2[%c0_1, %c0_2] : memref<16x128xbf16, #tpu.memory_space<vmem>>, vector<16x128xbf16>
    %cst = arith.constant dense<0.000000e+00> : vector<16x128xf32>
    %2 = tpu.matmul %0, %1, %cst {dimension_numbers = #tpu.dot_dimension_numbers<[1], [0], [0], [1], [0, 0, 1, 1], [], []>} : vector<16x16xbf16>, vector<16x128xbf16>, vector<16x128xf32> -> vector<16x128xf32>
    %c0_3 = arith.constant 0 : index
    %c0_4 = arith.constant 0 : index
    %3 = vector.load %arg3[%c0_3, %c0_4] : memref<1x128xf32, #tpu.memory_space<vmem>>, vector<1x128xf32>
    %4 = vector.broadcast %3 : vector<1x128xf32> to vector<16x128xf32>
    %5 = arith.addf %2, %4 : vector<16x128xf32>
    %cst_5 = arith.constant 0.000000e+00 : f32
    %6 = vector.broadcast %cst_5 : f32 to vector<16x128xf32>
    %7 = arith.cmpf ogt, %5, %6 : vector<16x128xf32>
    %cst_6 = arith.constant 0.00999999977 : f32
    %8 = vector.broadcast %cst_6 : f32 to vector<16x128xf32>
    %9 = arith.mulf %8, %5 : vector<16x128xf32>
    %10 = arith.select %7, %5, %9 : vector<16x128xi1>, vector<16x128xf32>
    %11 = arith.truncf %10 : vector<16x128xf32> to vector<16x128xbf16>
    %c0_7 = arith.constant 0 : index
    %c0_8 = arith.constant 0 : index
    %12 = vector.load %arg4[%c0_7, %c0_8] : memref<128x128xbf16, #tpu.memory_space<vmem>>, vector<128x128xbf16>
    %cst_9 = arith.constant dense<0.000000e+00> : vector<16x128xf32>
    %13 = tpu.matmul %11, %12, %cst_9 {dimension_numbers = #tpu.dot_dimension_numbers<[1], [0], [0], [1], [0, 0, 1, 1], [], []>} : vector<16x128xbf16>, vector<128x128xbf16>, vector<16x128xf32> -> vector<16x128xf32>
    %c0_10 = arith.constant 0 : index
    %c0_11 = arith.constant 0 : index
    %14 = vector.load %arg5[%c0_10, %c0_11] : memref<1x128xf32, #tpu.memory_space<vmem>>, vector<1x128xf32>
    %15 = vector.broadcast %14 : vector<1x128xf32> to vector<16x128xf32>
    %16 = arith.addf %13, %15 : vector<16x128xf32>
    %cst_12 = arith.constant 0.000000e+00 : f32
    %17 = vector.broadcast %cst_12 : f32 to vector<16x128xf32>
    %18 = arith.cmpf ogt, %16, %17 : vector<16x128xf32>
    %cst_13 = arith.constant 0.00999999977 : f32
    %19 = vector.broadcast %cst_13 : f32 to vector<16x128xf32>
    %20 = arith.mulf %19, %16 : vector<16x128xf32>
    %21 = arith.select %18, %16, %20 : vector<16x128xi1>, vector<16x128xf32>
    %22 = arith.truncf %21 : vector<16x128xf32> to vector<16x128xbf16>
    %c0_14 = arith.constant 0 : index
    %c0_15 = arith.constant 0 : index
    %23 = vector.load %arg6[%c0_14, %c0_15] : memref<128x128xbf16, #tpu.memory_space<vmem>>, vector<128x128xbf16>
    %cst_16 = arith.constant dense<0.000000e+00> : vector<16x128xf32>
    %24 = tpu.matmul %22, %23, %cst_16 {dimension_numbers = #tpu.dot_dimension_numbers<[1], [0], [0], [1], [0, 0, 1, 1], [], []>} : vector<16x128xbf16>, vector<128x128xbf16>, vector<16x128xf32> -> vector<16x128xf32>
    %c0_17 = arith.constant 0 : index
    %c0_18 = arith.constant 0 : index
    %25 = vector.load %arg7[%c0_17, %c0_18] : memref<1x128xf32, #tpu.memory_space<vmem>>, vector<1x128xf32>
    %26 = vector.broadcast %25 : vector<1x128xf32> to vector<16x128xf32>
    %27 = arith.addf %24, %26 : vector<16x128xf32>
    %cst_19 = arith.constant 0.000000e+00 : f32
    %28 = vector.broadcast %cst_19 : f32 to vector<16x128xf32>
    %29 = arith.cmpf ogt, %27, %28 : vector<16x128xf32>
    %cst_20 = arith.constant 0.00999999977 : f32
    %30 = vector.broadcast %cst_20 : f32 to vector<16x128xf32>
    %31 = arith.mulf %30, %27 : vector<16x128xf32>
    %32 = arith.select %29, %27, %31 : vector<16x128xi1>, vector<16x128xf32>
    %c0_21 = arith.constant 0 : index
    %c0_22 = arith.constant 0 : index
    %33 = vector.load %arg8[%c0_21, %c0_22] : memref<1x128xf32, #tpu.memory_space<vmem>>, vector<1x128xf32>
    %34 = vector.broadcast %33 : vector<1x128xf32> to vector<16x128xf32>
    %35 = arith.mulf %32, %34 : vector<16x128xf32>
    %cst_23 = arith.constant dense<0.000000e+00> : vector<16xf32>
    %36 = vector.multi_reduction <add>, %35, %cst_23 [1] : vector<16x128xf32> to vector<16xf32>
    %37 = vector.shape_cast %36 : vector<16xf32> to vector<16x1xf32>
    %c0_24 = arith.constant 0 : index
    %38 = memref.load %arg9[%c0_24] : memref<1xf32, #tpu.memory_space<smem>>
    %39 = vector.broadcast %38 : f32 to vector<16x1xf32>
    %40 = arith.addf %37, %39 : vector<16x1xf32>
    %c0_25 = arith.constant 0 : index
    %c0_26 = arith.constant 0 : index
    %41 = vector.load %arg10[%c0_25, %c0_26] : memref<16x1xf32, #tpu.memory_space<vmem>>, vector<16x1xf32>
    tpu.vector_store %arg10[%c0_25, %c0_26], %40 {strides = array<i32>} : memref<16x1xf32, #tpu.memory_space<vmem>>, vector<16x1xf32>,
    return
  }
  func.func @transform_0(%arg0: i32) -> (i32, i32) {
    %c0_i32 = arith.constant 0 : i32
    %c0_i32_0 = arith.constant 0 : i32
    return %arg0, %c0_i32 : i32, i32
  }
  func.func @transform_1(%arg0: i32) -> (i32, i32) {
    %c0_i32 = arith.constant 0 : i32
    %c0_i32_0 = arith.constant 0 : i32
    %c0_i32_1 = arith.constant 0 : i32
    return %c0_i32, %c0_i32_0 : i32, i32
  }
  func.func @transform_2(%arg0: i32) -> (i32, i32) {
    %c0_i32 = arith.constant 0 : i32
    %c0_i32_0 = arith.constant 0 : i32
    %c0_i32_1 = arith.constant 0 : i32
    return %c0_i32, %c0_i32_0 : i32, i32
  }
  func.func @transform_3(%arg0: i32) -> (i32, i32) {
    %c0_i32 = arith.constant 0 : i32
    %c0_i32_0 = arith.constant 0 : i32
    %c0_i32_1 = arith.constant 0 : i32
    return %c0_i32, %c0_i32_0 : i32, i32
  }
  func.func @transform_4(%arg0: i32) -> (i32, i32) {
    %c0_i32 = arith.constant 0 : i32
    %c0_i32_0 = arith.constant 0 : i32
    %c0_i32_1 = arith.constant 0 : i32
    return %c0_i32, %c0_i32_0 : i32, i32
  }
  func.func @transform_5(%arg0: i32) -> (i32, i32) {
    %c0_i32 = arith.constant 0 : i32
    %c0_i32_0 = arith.constant 0 : i32
    %c0_i32_1 = arith.constant 0 : i32
    return %c0_i32, %c0_i32_0 : i32, i32
  }
  func.func @transform_6(%arg0: i32) -> (i32, i32) {
    %c0_i32 = arith.constant 0 : i32
    %c0_i32_0 = arith.constant 0 : i32
    %c0_i32_1 = arith.constant 0 : i32
    return %c0_i32, %c0_i32_0 : i32, i32
  }
  func.func @transform_7(%arg0: i32) -> (i32, i32) {
    %c0_i32 = arith.constant 0 : i32
    %c0_i32_0 = arith.constant 0 : i32
    %c0_i32_1 = arith.constant 0 : i32
    return %c0_i32, %c0_i32_0 : i32, i32
  }
  func.func @transform_8(%arg0: i32) -> i32 {
    %c0_i32 = arith.constant 0 : i32
    %c0_i32_0 = arith.constant 0 : i32
    return %c0_i32 : i32
  }
  func.func @transform_9(%arg0: i32) -> (i32, i32) {
    %c0_i32 = arith.constant 0 : i32
    %c0_i32_0 = arith.constant 0 : i32
    return %arg0, %c0_i32 : i32, i32
  }
}

</mosaic_0001>

<llo_original>
// kernel: tpu_custom_call.1
$region0: #{tpu_custom_call.1}
  #allocation0 [shape = 'u32[]', space=smem, size = 0x4, offset = 0x4, fixed_abs, tag = 'smem constant byte address 0x4 - core index']
  #allocation1 [shape = 'u32[72,128]{1,0:T(1,128)}', space=vmem, size = 0x9000, scoped, tag = 'internal scratch']
  #allocation2 [shape = 'f32[1]{0:T(128)S(6)}', space=smem, size = 0x200, scoped, tag = 'scoped memory for tpu_custom_call.1']
  %s0 = inlined_call_operand.hbm [shape: bf16[16,16], index: 0, kind: input, shape index: {}]
  %s1 = inlined_call_operand.hbm [shape: bf16[16,128], index: 1, kind: input, shape index: {}]
  %s2 = inlined_call_operand.vmem [shape: f32[1,128], index: 2, kind: input, shape index: {}]
  %s3 = inlined_call_operand.hbm [shape: bf16[128,128], index: 3, kind: input, shape index: {}]
  %s4 = inlined_call_operand.vmem [shape: f32[1,128], index: 4, kind: input, shape index: {}]
  %s5 = inlined_call_operand.hbm [shape: bf16[128,128], index: 5, kind: input, shape index: {}]
  %s6 = inlined_call_operand.vmem [shape: f32[1,128], index: 6, kind: input, shape index: {}]
  %s7 = inlined_call_operand.vmem [shape: f32[1,128], index: 7, kind: input, shape index: {}]
  %s8 = inlined_call_operand.<no memory space> [shape: f32[1], index: 8, kind: input, shape index: {}]
  %s9 = inlined_call_operand.vmem [shape: f32[16,1], index: 9, kind: output, shape index: {}]
  %s10 = sld [smem:[#allocation0]]
  $region62: #{tpu_custom_call.1} parent=0
    _
  %s12 = ssub.s32 1, %s10
  %s13 = scalar_select 0, %s12, %s10
  %14 = sst [smem:[#allocation2]] %s8
  $region1: #{tpu_custom_call.1} parent=0
    #allocation3 [shape = 'u8[4096]{0}', space=vmem, size = 0x1000, scoped, tag = 'input window, operand 0, single buffered']
    #allocation4 [shape = 's32[1]{0}', space=sflag, size = 0x4, scoped, tag = 'scoped memory for tpu_custom_call.1']
    #allocation5 [shape = 'u8[4096]{0}', space=vmem, size = 0x1000, scoped, tag = 'input window, operand 1, single buffered']
    #allocation6 [shape = 's32[1]{0}', space=sflag, size = 0x4, scoped, tag = 'scoped memory for tpu_custom_call.1']
    #allocation7 [shape = 'u8[32768]{0}', space=vmem, size = 0x8000, scoped, tag = 'input window, operand 3, single buffered']
    #allocation8 [shape = 'u8[32768]{0}', space=vmem, size = 0x8000, scoped, tag = 'input window, operand 5, single buffered']
    #allocation9 [shape = 's32[1]{0}', space=sflag, size = 0x4, scoped, tag = 'scoped memory for tpu_custom_call.1']
    %15 = vsyncpa [#allocation4], 0
    %16 = vsyncpa [#allocation6], 0
    %17 = vsyncpa [#allocation9], 0
    // Predicated region
    $region2: #{tpu_custom_call.1} parent=1 // pred_check
      _
    $region3: #{tpu_custom_call.1} parent=1 // pred_check_branch
      %19 = sbr.rel (0) target = $region5
    $region4: #{tpu_custom_call.1} parent=1 // pred_region
      %21 = vsyncadd [#allocation4], 0
      %s22 = sshll.u32 %s0, 4
      %s23 = int_to_ptr.hbm [resolvable:$true] %s22
      %s24 = sshll.u32 [#allocation3], 4
      %s25 = int_to_ptr.vmem [resolvable:$true] %s24
      %30 = dma.hbm_to_vmem [thread:$0]  %s23, 128, %s25, [#allocation4], 64, 64, 4
    $region5: #{tpu_custom_call.1} parent=1 // pred_fallthru
      _
    // Predicated region
    $region6: #{tpu_custom_call.1} parent=1 // pred_check
      _
    $region7: #{tpu_custom_call.1} parent=1 // pred_check_branch
      %32 = sbr.rel (0) target = $region9
    $region8: #{tpu_custom_call.1} parent=1 // pred_region
      %34 = vsyncadd [#allocation6], 0
      %s35 = sshll.u32 %s1, 4
      %s36 = int_to_ptr.hbm [resolvable:$true] %s35
      %s37 = sshll.u32 [#allocation5], 4
      %s38 = int_to_ptr.vmem [resolvable:$true] %s37
      %43 = dma.hbm_to_vmem [thread:$0]  %s36, 128, %s38, [#allocation6], 64, 64, 4
    $region9: #{tpu_custom_call.1} parent=1 // pred_fallthru
      _
    // Predicated region
    $region10: #{tpu_custom_call.1} parent=1 // pred_check
      _
    $region11: #{tpu_custom_call.1} parent=1 // pred_check_branch
      %45 = sbr.rel (0) target = $region13
    $region12: #{tpu_custom_call.1} parent=1 // pred_region
      _
    $region13: #{tpu_custom_call.1} parent=1 // pred_fallthru
      _
    // Predicated region
    $region14: #{tpu_custom_call.1} parent=1 // pred_check
      _
    $region15: #{tpu_custom_call.1} parent=1 // pred_check_branch
      %47 = sbr.rel (0) target = $region17
    $region16: #{tpu_custom_call.1} parent=1 // pred_region
      %49 = vsyncadd [#allocation6], 0
      %s50 = sshll.u32 %s3, 4
      %s51 = int_to_ptr.hbm [resolvable:$true] %s50
      %s52 = sshll.u32 [#allocation7], 4
      %s53 = int_to_ptr.vmem [resolvable:$true] %s52
      %58 = dma.hbm_to_vmem [thread:$0]  %s51, 1024, %s53, [#allocation6], 64, 64, 4
    $region17: #{tpu_custom_call.1} parent=1 // pred_fallthru
      _
    // Predicated region
    $region18: #{tpu_custom_call.1} parent=1 // pred_check
      _
    $region19: #{tpu_custom_call.1} parent=1 // pred_check_branch
      %60 = sbr.rel (0) target = $region21
    $region20: #{tpu_custom_call.1} parent=1 // pred_region
      _
    $region21: #{tpu_custom_call.1} parent=1 // pred_fallthru
      _
    // Predicated region
    $region22: #{tpu_custom_call.1} parent=1 // pred_check
      _
    $region23: #{tpu_custom_call.1} parent=1 // pred_check_branch
      %62 = sbr.rel (0) target = $region25
    $region24: #{tpu_custom_call.1} parent=1 // pred_region
      %64 = vsyncadd [#allocation9], 0
      %s65 = sshll.u32 %s5, 4
      %s66 = int_to_ptr.hbm [resolvable:$true] %s65
      %s67 = sshll.u32 [#allocation8], 4
      %s68 = int_to_ptr.vmem [resolvable:$true] %s67
      %73 = dma.hbm_to_vmem [thread:$0]  %s66, 1024, %s68, [#allocation9], 64, 64, 4
    $region25: #{tpu_custom_call.1} parent=1 // pred_fallthru
      _
    // Predicated region
    $region26: #{tpu_custom_call.1} parent=1 // pred_check
      _
    $region27: #{tpu_custom_call.1} parent=1 // pred_check_branch
      %75 = sbr.rel (0) target = $region29
    $region28: #{tpu_custom_call.1} parent=1 // pred_region
      _
    $region29: #{tpu_custom_call.1} parent=1 // pred_fallthru
      _
    // Predicated region
    $region30: #{tpu_custom_call.1} parent=1 // pred_check
      _
    $region31: #{tpu_custom_call.1} parent=1 // pred_check_branch
      %77 = sbr.rel (0) target = $region33
    $region32: #{tpu_custom_call.1} parent=1 // pred_region
      _
    $region33: #{tpu_custom_call.1} parent=1 // pred_fallthru
      _
    // Predicated region
    $region34: #{tpu_custom_call.1} parent=1 // pred_check
      _
    $region35: #{tpu_custom_call.1} parent=1 // pred_check_branch
      %79 = sbr.rel (0) target = $region37
    $region36: #{tpu_custom_call.1} parent=1 // pred_region
      _
    $region37: #{tpu_custom_call.1} parent=1 // pred_fallthru
      _
    // Predicated region
    $region38: #{tpu_custom_call.1} parent=1 // pred_check
      _
    $region39: #{tpu_custom_call.1} parent=1 // pred_check_branch
      %81 = sbr.rel (0) target = $region41
    $region40: #{tpu_custom_call.1} parent=1 // pred_region
      %83 = dma.done [#allocation4], 128
    $region41: #{tpu_custom_call.1} parent=1 // pred_fallthru
      _
    // Predicated region
    $region42: #{tpu_custom_call.1} parent=1 // pred_check
      _
    $region43: #{tpu_custom_call.1} parent=1 // pred_check_branch
      %85 = sbr.rel (0) target = $region45
    $region44: #{tpu_custom_call.1} parent=1 // pred_region
      %87 = dma.done [#allocation6], 128
    $region45: #{tpu_custom_call.1} parent=1 // pred_fallthru
      _
    // Predicated region
    $region46: #{tpu_custom_call.1} parent=1 // pred_check
      _
    $region47: #{tpu_custom_call.1} parent=1 // pred_check_branch
      %89 = sbr.rel (0) target = $region49
    $region48: #{tpu_custom_call.1} parent=1 // pred_region
      %91 = dma.done [#allocation6], 1024
    $region49: #{tpu_custom_call.1} parent=1 // pred_fallthru
      _
    // Predicated region
    $region50: #{tpu_custom_call.1} parent=1 // pred_check
      _
    $region51: #{tpu_custom_call.1} parent=1 // pred_check_branch
      %93 = sbr.rel (0) target = $region53
    $region52: #{tpu_custom_call.1} parent=1 // pred_region
      %95 = dma.done [#allocation9], 1024
    $region53: #{tpu_custom_call.1} parent=1 // pred_fallthru
      _
    %v97 = vld [vmem:[#allocation3] sm:$0xf]
    %v98 = vld [vmem:[#allocation3 + $0x4] sm:$0xf]
    %v99 = vld [vmem:[#allocation5] sm:$0xf]
    %v100 = vld [vmem:[#allocation5 + $0x4] sm:$0xf]
    %v101 = vld [vmem:[%s2] sm:$0x1]
    %v103 = vperm.slane %v101, 0
    %v107 = vunpack.c.l.b16 %v97
    %v108 = vunpack.c.l.b16 %v98
    %v109 = vpack.c.b16 %v108, %v107
    %v112 = vunpack.c.l.b16 %v99
    %v113 = vunpack.c.l.b16 %v100
    %v114 = vpack.c.b16 %v113, %v112
    %vm116 = vcmask 130048
    %v118 = vsel %vm116, %v109, 0
    %120 = vmatpush.bf16.msra.mxu0 0
    %121 = vmatpush.bf16.msra.mxu0 0
    %122 = vmatpush.bf16.msra.mxu0 0
    %123 = vmatpush.bf16.msra.mxu0 0
    %124 = vmatpush.bf16.msra.mxu0 0
    %125 = vmatpush.bf16.msra.mxu0 0
    %126 = vmatpush.bf16.msra.mxu0 0
    %127 = vmatpush.bf16.msra.mxu0 %v114
    %128 = vmatmul.bf16.gmra.mxu0 %v118
    %v129 = vpop.f32.mrf.mxu0
    %v130 = vadd.f32 %v103, %v129
    %v131 = vpop.f32.mrf.mxu0
    %v132 = vadd.f32 %v103, %v131
    %133 = vdwg.mxu0
    %vm134 = vcmp.gt.f32.partialorder %v130, 0.0
    %vm135 = vcmp.gt.f32.partialorder %v132, 0.0
    %v136 = vmul.f32 %v130, 0.01
    %v137 = vmul.f32 %v132, 0.01
    %v138 = vsel %vm134, %v130, %v136
    %v139 = vsel %vm135, %v132, %v137
    %v140 = vpack.c.bf16 %v139, %v138
    %v141 = vld [vmem:[#allocation7] sm:$0xf]
    %v142 = vld [vmem:[#allocation7 + $0x4] sm:$0xf]
    %v143 = vld [vmem:[#allocation7 + $0x8] sm:$0xf]
    %v144 = vld [vmem:[#allocation7 + $0xc] sm:$0xf]
    %v145 = vld [vmem:[#allocation7 + $0x10] sm:$0xf]
    %v146 = vld [vmem:[#allocation7 + $0x14] sm:$0xf]
    %v147 = vld [vmem:[#allocation7 + $0x18] sm:$0xf]
    %v148 = vld [vmem:[#allocation7 + $0x1c] sm:$0xf]
    %v149 = vld [vmem:[#allocation7 + $0x20] sm:$0xf]
    %v150 = vld [vmem:[#allocation7 + $0x24] sm:$0xf]
    %v151 = vld [vmem:[#allocation7 + $0x28] sm:$0xf]
    %v152 = vld [vmem:[#allocation7 + $0x2c] sm:$0xf]
    %v153 = vld [vmem:[#allocation7 + $0x30] sm:$0xf]
    %v154 = vld [vmem:[#allocation7 + $0x34] sm:$0xf]
    %v155 = vld [vmem:[#allocation7 + $0x38] sm:$0xf]
    %v156 = vld [vmem:[#allocation7 + $0x3c] sm:$0xf]
    %v157 = vld [vmem:[%s4] sm:$0x1]
    %v159 = vperm.slane %v157, 0
    %v177 = vunpack.c.l.b16 %v141
    %v178 = vunpack.c.l.b16 %v142
    %v179 = vunpack.c.l.b16 %v143
    %v180 = vunpack.c.l.b16 %v144
    %v181 = vunpack.c.l.b16 %v145
    %v182 = vunpack.c.l.b16 %v146
    %v183 = vunpack.c.l.b16 %v147
    %v184 = vunpack.c.l.b16 %v148
    %v185 = vunpack.c.l.b16 %v149
    %v186 = vunpack.c.l.b16 %v150
    %v187 = vunpack.c.l.b16 %v151
    %v188 = vunpack.c.l.b16 %v152
    %v189 = vunpack.c.l.b16 %v153
    %v190 = vunpack.c.l.b16 %v154
    %v191 = vunpack.c.l.b16 %v155
    %v192 = vunpack.c.l.b16 %v156
    %v193 = vpack.c.b16 %v178, %v177
    %v194 = vpack.c.b16 %v180, %v179
    %v195 = vpack.c.b16 %v182, %v181
    %v196 = vpack.c.b16 %v184, %v183
    %v197 = vpack.c.b16 %v186, %v185
    %v198 = vpack.c.b16 %v188, %v187
    %v199 = vpack.c.b16 %v190, %v189
    %v200 = vpack.c.b16 %v192, %v191
    %209 = vmatpush.bf16.msra.mxu0 %v200
    %210 = vmatpush.bf16.msra.mxu0 %v199
    %211 = vmatpush.bf16.msra.mxu0 %v198
    %212 = vmatpush.bf16.msra.mxu0 %v197
    %213 = vmatpush.bf16.msra.mxu0 %v196
    %214 = vmatpush.bf16.msra.mxu0 %v195
    %215 = vmatpush.bf16.msra.mxu0 %v194
    %216 = vmatpush.bf16.msra.mxu0 %v193
    %217 = vmatmul.bf16.gmra.mxu0 %v140
    %v218 = vpop.f32.mrf.mxu0
    %v219 = vadd.f32 %v159, %v218
    %v220 = vpop.f32.mrf.mxu0
    %v221 = vadd.f32 %v159, %v220
    %222 = vdwg.mxu0
    %vm223 = vcmp.gt.f32.partialorder %v219, 0.0
    %vm224 = vcmp.gt.f32.partialorder %v221, 0.0
    %v225 = vmul.f32 %v219, 0.01
    %v226 = vmul.f32 %v221, 0.01
    %v227 = vsel %vm223, %v219, %v225
    %v228 = vsel %vm224, %v221, %v226
    %v229 = vpack.c.bf16 %v228, %v227
    %v230 = vld [vmem:[#allocation8] sm:$0xf]
    %v231 = vld [vmem:[#allocation8 + $0x4] sm:$0xf]
    %v232 = vld [vmem:[#allocation8 + $0x8] sm:$0xf]
    %v233 = vld [vmem:[#allocation8 + $0xc] sm:$0xf]
    %v234 = vld [vmem:[#allocation8 + $0x10] sm:$0xf]
    %v235 = vld [vmem:[#allocation8 + $0x14] sm:$0xf]
    %v236 = vld [vmem:[#allocation8 + $0x18] sm:$0xf]
    %v237 = vld [vmem:[#allocation8 + $0x1c] sm:$0xf]
    %v238 = vld [vmem:[#allocation8 + $0x20] sm:$0xf]
    %v239 = vld [vmem:[#allocation8 + $0x24] sm:$0xf]
    %v240 = vld [vmem:[#allocation8 + $0x28] sm:$0xf]
    %v241 = vld [vmem:[#allocation8 + $0x2c] sm:$0xf]
    %v242 = vld [vmem:[#allocation8 + $0x30] sm:$0xf]
    %v243 = vld [vmem:[#allocation8 + $0x34] sm:$0xf]
    %v244 = vld [vmem:[#allocation8 + $0x38] sm:$0xf]
    %v245 = vld [vmem:[#allocation8 + $0x3c] sm:$0xf]
    %v246 = vld [vmem:[%s6] sm:$0x1]
    %v248 = vperm.slane %v246, 0
    %v266 = vunpack.c.l.b16 %v230
    %v267 = vunpack.c.l.b16 %v231
    %v268 = vunpack.c.l.b16 %v232
    %v269 = vunpack.c.l.b16 %v233
    %v270 = vunpack.c.l.b16 %v234
    %v271 = vunpack.c.l.b16 %v235
    %v272 = vunpack.c.l.b16 %v236
    %v273 = vunpack.c.l.b16 %v237
    %v274 = vunpack.c.l.b16 %v238
    %v275 = vunpack.c.l.b16 %v239
    %v276 = vunpack.c.l.b16 %v240
    %v277 = vunpack.c.l.b16 %v241
    %v278 = vunpack.c.l.b16 %v242
    %v279 = vunpack.c.l.b16 %v243
    %v280 = vunpack.c.l.b16 %v244
    %v281 = vunpack.c.l.b16 %v245
    %v282 = vpack.c.b16 %v267, %v266
    %v283 = vpack.c.b16 %v269, %v268
    %v284 = vpack.c.b16 %v271, %v270
    %v285 = vpack.c.b16 %v273, %v272
    %v286 = vpack.c.b16 %v275, %v274
    %v287 = vpack.c.b16 %v277, %v276
    %v288 = vpack.c.b16 %v279, %v278
    %v289 = vpack.c.b16 %v281, %v280
    %298 = vmatpush.bf16.msra.mxu0 %v289
    %299 = vmatpush.bf16.msra.mxu0 %v288
    %300 = vmatpush.bf16.msra.mxu0 %v287
    %301 = vmatpush.bf16.msra.mxu0 %v286
    %302 = vmatpush.bf16.msra.mxu0 %v285
    %303 = vmatpush.bf16.msra.mxu0 %v284
    %304 = vmatpush.bf16.msra.mxu0 %v283
    %305 = vmatpush.bf16.msra.mxu0 %v282
    %306 = vmatmul.bf16.gmra.mxu0 %v229
    %v307 = vpop.f32.mrf.mxu0
    %v308 = vadd.f32 %v248, %v307
    %v309 = vpop.f32.mrf.mxu0
    %v310 = vadd.f32 %v248, %v309
    %311 = vdwg.mxu0
    %vm312 = vcmp.gt.f32.partialorder %v308, 0.0
    %vm313 = vcmp.gt.f32.partialorder %v310, 0.0
    %v314 = vmul.f32 %v308, 0.01
    %v315 = vmul.f32 %v310, 0.01
    %v316 = vsel %vm312, %v308, %v314
    %v317 = vsel %vm313, %v310, %v315
    %v318 = vld [vmem:[%s7] sm:$0x1]
    %v320 = vperm.slane %v318, 0
    %v322 = vmul.f32 %v316, %v320
    %v323 = vmul.f32 %v317, %v320
    %324 = vadd.xlane.f32.xlu0 %v322
    %v325 = vpop.xlane.xlu0 %324
    %326 = vadd.xlane.f32.xlu0 %v323
    %v327 = vpop.xlane.xlu0 %326
    %s328 = sld [smem:[#allocation2]]
    %v329 = vstv %s328
    %v330 = vadd.f32 %v325, %v329
    %v331 = vadd.f32 %v327, %v329
    %vm332 = vcmask 7168
    %333 = vst.msk [vmem:[%s9] sm:$0xff] %vm332, %v330
    %334 = vst.msk [vmem:[%s9 + $0x8] sm:$0xff] %vm332, %v331
    // Predicated region
    $region54: #{tpu_custom_call.1} parent=1 // pred_check
      _
    $region55: #{tpu_custom_call.1} parent=1 // pred_check_branch
      %336 = sbr.rel (0) target = $region57
    $region56: #{tpu_custom_call.1} parent=1 // pred_region
      _
    $region57: #{tpu_custom_call.1} parent=1 // pred_fallthru
      _
    // Predicated region
    $region58: #{tpu_custom_call.1} parent=1 // pred_check
      _
    $region59: #{tpu_custom_call.1} parent=1 // pred_check_branch
      %338 = sbr.rel (0) target = $region61
    $region60: #{tpu_custom_call.1} parent=1 // pred_region
      _
    $region61: #{tpu_custom_call.1} parent=1 // pred_fallthru
      _
    %339 = vsyncpa [#allocation4], 1
    %340 = vsyncpa [#allocation6], 1
    %341 = vsyncpa [#allocation9], 1

</llo_original>
